<compile_context>
chip_gen: v7x
topology: tpu7x:2x2x1
jax: 0.10.0
libtpu: 0.0.40
codegen_flags: <defaults>
</compile_context>

<pallas_src>
import functools

import jax
import jax.numpy as jnp
from jax import lax
from jax.experimental import pallas as pl
from jax.experimental.pallas import tpu as pltpu


LANES = 128                       # vreg lane width (last dim of every tile)
SUBLANES = 8                      # f32 vreg sublane count
ACC_ROWS_MAX = 64                 # resident accumulator rows (8 f32 vregs)
TARGET_BLOCK_BYTES = 2 * 1024 * 1024   # ~2 MiB of input bytes per block
SMALL_INPUT_BYTES = 1 << 20       # below this, a fused XLA reduce beats a pallas_call


def _round_up(a: int, b: int) -> int:
    return ((a + b - 1) // b) * b


def _mse_partial_kernel(x_ref, t_ref, acc_ref, *, total_rows, tile_rows, acc_rows):
    """Accumulate squared differences of one (tile_rows, 128) block into a
    resident (acc_rows, 128) f32 accumulator block."""
    i = pl.program_id(0)

    @pl.when(i == 0)
    def _init():
        acc_ref[...] = jnp.zeros_like(acc_ref)

    d = x_ref[...].astype(jnp.float32) - t_ref[...].astype(jnp.float32)
    d2 = d * d

    if total_rows % tile_rows != 0:
        # Ragged last block: rows at/after `total_rows` hold stale VMEM data
        # (Pallas only DMAs the in-bounds region), so mask them to zero.  The
        # bound is static, so this branch is compiled in only when needed.
        row = lax.broadcasted_iota(jnp.int32, (tile_rows, 1), 0)
        valid = (i * tile_rows + row) < total_rows
        d2 = jnp.where(valid, d2, 0.0)

    # (tile_rows,128) -> (tile_rows//acc_rows, acc_rows, 128): regroups whole
    # vregs (free); the axis-0 sum forms acc_rows/8 independent vreg-add chains
    # so no single serial add chain bounds the step, then one add per vreg into
    # the resident accumulator.  No per-step XLU cross-lane reduction.
    acc_ref[...] += d2.reshape(-1, acc_rows, LANES).sum(axis=0)


def content_loss_forward(x, target, *, block_rows=None,
                         min_kernel_bytes=SMALL_INPUT_BYTES):
    """Returns (input_passthrough, mse_loss_scalar) matching ContentLoss.forward.

    block_rows: optional override of the tile row count (testing / tuning).
    min_kernel_bytes: inputs smaller than this use XLA's fused reduce directly.
    """
    assert x.shape == target.shape, "input and target must have identical shapes"
    n = x.size
    itemsize = jnp.dtype(x.dtype).itemsize
    inv_n = jnp.float32(1.0 / float(n))

    # Fast paths: (a) tiny inputs, where pallas_call launch overhead dominates;
    # (b) non-lane-aligned element counts, where forming a (rows,128) slab would
    # require a padded HBM copy of BOTH operands -- strictly worse than XLA's
    # fused reduce, which reads each operand exactly once.
    # TODO(synk): a 1-D masked-block kernel could cover the ragged case without
    # any copy; real conv activations are always 128-aligned, so it is rare.
    if n * itemsize < min_kernel_bytes or n % LANES != 0:
        diff = x.astype(jnp.float32) - target.astype(jnp.float32)
        return x, jnp.sum(diff * diff) * inv_n

    rows = n // LANES
    acc_rows = min(ACC_ROWS_MAX, _round_up(rows, SUBLANES))
    if block_rows is None:
        # Dtype-aware: keep ~2 MiB of input bytes per block (4096 rows for f32,
        # 8192 for bf16), rounded to a multiple of acc_rows.
        max_tile_rows = max(
            acc_rows,
            (TARGET_BLOCK_BYTES // (LANES * itemsize)) // acc_rows * acc_rows)
        tile_rows = min(max_tile_rows, _round_up(rows, acc_rows))
    else:
        tile_rows = _round_up(block_rows, acc_rows)
    num_blocks = pl.cdiv(rows, tile_rows)

    # Free reshape of a contiguous row-major array: no padding, no HBM copy.
    x2d = x.reshape(rows, LANES)
    t2d = target.reshape(rows, LANES)

    kernel = functools.partial(_mse_partial_kernel, total_rows=rows,
                               tile_rows=tile_rows, acc_rows=acc_rows)

    partial_sums = pl.pallas_call(
        kernel,
        out_shape=jax.ShapeDtypeStruct((acc_rows, LANES), jnp.float32),
        grid_spec=pltpu.PrefetchScalarGridSpec(
            num_scalar_prefetch=0,
            grid=(num_blocks,),
            in_specs=[
                pl.BlockSpec((tile_rows, LANES), lambda i: (i, 0)),
                pl.BlockSpec((tile_rows, LANES), lambda i: (i, 0)),
            ],
            # Same block index every step => resident accumulator block.
            out_specs=pl.BlockSpec((acc_rows, LANES), lambda i: (0, 0)),
        ),
        compiler_params=pltpu.CompilerParams(
            dimension_semantics=("arbitrary",),
            vmem_limit_bytes=32 * 1024 * 1024),
        cost_estimate=pl.CostEstimate(
            flops=3 * n,
            transcendentals=0,
            bytes_accessed=2 * n * itemsize + acc_rows * LANES * 4),
    )(x2d, t2d)

    # Tiny final cross-lane reduce (<= 64*128 elems) + mean scaling in wrapper.
    loss = jnp.sum(partial_sums) * inv_n

    # ContentLoss.forward returns the input unchanged; the loss is a side value.
    # TODO(synk): PyTorch stores the loss as module state (self.loss); here it
    # is returned as a second output instead.
    return x, loss


if __name__ == "__main__":
    key = jax.random.PRNGKey(0)
    k1, k2, k3, k4 = jax.random.split(key, 4)

    # Case 1: small NCHW activation (batch=2, channels=4, spatial=16x16).
    # 2048 elements = 16 rows of 128 (lane-aligned, single exact block).
    # min_kernel_bytes=0 forces the Pallas path despite the small size.
    shape1 = (2, 4, 16, 16)
    x1 = jax.random.normal(k1, shape1, dtype=jnp.float32)
    t1 = jax.random.normal(k2, shape1, dtype=jnp.float32)
    out1, loss1 = content_loss_forward(x1, t1, min_kernel_bytes=0)
    out1 = jax.block_until_ready(out1)
    loss1 = jax.block_until_ready(loss1)
    ref1 = jnp.mean((x1 - t1) ** 2)
    assert jnp.allclose(loss1, ref1, rtol=1e-5, atol=1e-6), (loss1, ref1)
    assert jnp.array_equal(out1, x1), "forward must return the input unchanged"

    # Case 2: lane-aligned but ragged row count (13824 elems = 108 rows of 128)
    # with a forced 64-row block: exercises multi-step accumulation (pl.when
    # init + resident accumulator) and the in-kernel tail mask.
    shape2 = (2, 8, 24, 36)
    x2 = jax.random.normal(k3, shape2, dtype=jnp.float32)
    t2 = jax.random.normal(k4, shape2, dtype=jnp.float32)
    out2, loss2 = content_loss_forward(x2, t2, min_kernel_bytes=0, block_rows=64)
    out2 = jax.block_until_ready(out2)
    loss2 = jax.block_until_ready(loss2)
    ref2 = jnp.mean((x2 - t2) ** 2)
    assert jnp.allclose(loss2, ref2, rtol=1e-5, atol=1e-6), (loss2, ref2)
    assert jnp.array_equal(out2, x2), "forward must return the input unchanged"

    print("KERNEL_OK")
</pallas_src>

<mosaic_0001>
module attributes {stable_mosaic.version = 11 : i64} {
  func.func @_mse_partial_kernel(%arg0: i32, %arg1: memref<16x128xf32, #tpu.memory_space<vmem>>, %arg2: memref<16x128xf32, #tpu.memory_space<vmem>>, %arg3: memref<16x128xf32, #tpu.memory_space<vmem>>) attributes {dimension_semantics = [#tpu.dimension_semantics<arbitrary>], iteration_bounds = array<i64: 1>, scalar_prefetch = 0 : i64, scratch_operands = 0 : i64, tpu.core_type = #tpu.core_type<tc>, window_params = [{transform_indices = @transform_0, window_bounds = array<i64: 16, 128>}, {transform_indices = @transform_1, window_bounds = array<i64: 16, 128>}, {pipeline_mode = #tpu.pipeline_mode<synchronous>, transform_indices = @transform_2, window_bounds = array<i64: 16, 128>}]} {
    %c0_i32 = arith.constant 0 : i32
    %0 = arith.cmpi eq, %arg0, %c0_i32 : i32
    %1 = arith.extui %0 : i1 to i32
    %c0_i32_0 = arith.constant 0 : i32
    %2 = arith.cmpi ne, %1, %c0_i32_0 : i32
    scf.if %2 {
      %cst_8 = arith.constant 0.000000e+00 : f32
      %12 = vector.broadcast %cst_8 : f32 to vector<16x128xf32>
      %c0_9 = arith.constant 0 : index
      %c0_10 = arith.constant 0 : index
      %13 = vector.load %arg3[%c0_9, %c0_10] : memref<16x128xf32, #tpu.memory_space<vmem>>, vector<16x128xf32>
      tpu.vector_store %arg3[%c0_9, %c0_10], %12 {strides = array<i32>} : memref<16x128xf32, #tpu.memory_space<vmem>>, vector<16x128xf32>,
    } else {
    }
    %c0 = arith.constant 0 : index
    %c0_1 = arith.constant 0 : index
    %3 = vector.load %arg1[%c0, %c0_1] : memref<16x128xf32, #tpu.memory_space<vmem>>, vector<16x128xf32>
    %c0_2 = arith.constant 0 : index
    %c0_3 = arith.constant 0 : index
    %4 = vector.load %arg2[%c0_2, %c0_3] : memref<16x128xf32, #tpu.memory_space<vmem>>, vector<16x128xf32>
    %5 = arith.subf %3, %4 : vector<16x128xf32>
    %6 = arith.mulf %5, %5 : vector<16x128xf32>
    %c0_4 = arith.constant 0 : index
    %c0_5 = arith.constant 0 : index
    %7 = vector.load %arg3[%c0_4, %c0_5] : memref<16x128xf32, #tpu.memory_space<vmem>>, vector<16x128xf32>
    %8 = vector.shape_cast %6 : vector<16x128xf32> to vector<1x16x128xf32>
    %cst = arith.constant dense<0.000000e+00> : vector<16x128xf32>
    %9 = vector.multi_reduction <add>, %8, %cst [0] : vector<1x16x128xf32> to vector<16x128xf32>
    %10 = arith.addf %7, %9 : vector<16x128xf32>
    %c0_6 = arith.constant 0 : index
    %c0_7 = arith.constant 0 : index
    %11 = vector.load %arg3[%c0_6, %c0_7] : memref<16x128xf32, #tpu.memory_space<vmem>>, vector<16x128xf32>
    tpu.vector_store %arg3[%c0_6, %c0_7], %10 {strides = array<i32>} : memref<16x128xf32, #tpu.memory_space<vmem>>, vector<16x128xf32>,
    return
  }
  func.func @transform_0(%arg0: i32) -> (i32, i32) {
    %c0_i32 = arith.constant 0 : i32
    %c0_i32_0 = arith.constant 0 : i32
    return %arg0, %c0_i32 : i32, i32
  }
  func.func @transform_1(%arg0: i32) -> (i32, i32) {
    %c0_i32 = arith.constant 0 : i32
    %c0_i32_0 = arith.constant 0 : i32
    return %arg0, %c0_i32 : i32, i32
  }
  func.func @transform_2(%arg0: i32) -> (i32, i32) {
    %c0_i32 = arith.constant 0 : i32
    %c0_i32_0 = arith.constant 0 : i32
    %c0_i32_1 = arith.constant 0 : i32
    return %c0_i32, %c0_i32_0 : i32, i32
  }
}

</mosaic_0001>

<llo_original>
// kernel: tpu_custom_call.1
$region0: #{tpu_custom_call.1}
  #allocation0 [shape = 'u32[]', space=smem, size = 0x4, offset = 0x4, fixed_abs, tag = 'smem constant byte address 0x4 - core index']
  #allocation1 [shape = 'u32[144,128]{1,0:T(1,128)}', space=vmem, size = 0x12000, scoped, tag = 'internal scratch']
  %s0 = inlined_call_operand.hbm [shape: f32[16,128], index: 0, kind: input, shape index: {}]
  %s1 = inlined_call_operand.hbm [shape: f32[16,128], index: 1, kind: input, shape index: {}]
  %s2 = inlined_call_operand.hbm [shape: f32[16,128], index: 2, kind: output, shape index: {}]
  %s3 = sld [smem:[#allocation0]]
  $region30: #{tpu_custom_call.1} parent=0
    _
  %s5 = ssub.s32 1, %s3
  %s6 = scalar_select 0, %s5, %s3
  $region1: #{tpu_custom_call.1} parent=0
    #allocation2 [shape = 'u8[8192]{0}', space=vmem, size = 0x2000, scoped, tag = 'input window, operand 0, single buffered']
    #allocation3 [shape = 's32[1]{0}', space=sflag, size = 0x4, scoped, tag = 'scoped memory for tpu_custom_call.1']
    #allocation4 [shape = 's32[1]{0}', space=sflag, size = 0x4, scoped, tag = 'scoped memory for tpu_custom_call.1']
    #allocation5 [shape = 'u8[8192]{0}', space=vmem, size = 0x2000, scoped, tag = 'input window, operand 1, single buffered']
    #allocation6 [shape = 's32[1]{0}', space=sflag, size = 0x4, scoped, tag = 'scoped memory for tpu_custom_call.1']
    #allocation7 [shape = 'u8[8192]{0}', space=vmem, size = 0x2000, scoped, tag = 'output window, operand 0, single buffered']
    %7 = vsyncpa [#allocation3], 0
    %8 = vsyncpa [#allocation6], 0
    %9 = vsyncpa [#allocation4], 0
    // Predicated region
    $region2: #{tpu_custom_call.1} parent=1 // pred_check
      _
    $region3: #{tpu_custom_call.1} parent=1 // pred_check_branch
      %11 = sbr.rel (0) target = $region5
    $region4: #{tpu_custom_call.1} parent=1 // pred_region
      %s13 = ssub.s32 256, 256
      %14 = vsyncadd [#allocation3], %s13
      %s15 = sshll.u32 [#allocation2], 4
      %s16 = int_to_ptr.vmem [resolvable:$true] %s15
      %21 = dma.hbm_to_vmem [thread:$0]  %s0, 256, %s16, [#allocation3], 128, 128, 8
    $region5: #{tpu_custom_call.1} parent=1 // pred_fallthru
      _
    // Predicated region
    $region6: #{tpu_custom_call.1} parent=1 // pred_check
      _
    $region7: #{tpu_custom_call.1} parent=1 // pred_check_branch
      %23 = sbr.rel (0) target = $region9
    $region8: #{tpu_custom_call.1} parent=1 // pred_region
      %s25 = ssub.s32 256, 256
      %26 = vsyncadd [#allocation6], %s25
      %s27 = sshll.u32 [#allocation5], 4
      %s28 = int_to_ptr.vmem [resolvable:$true] %s27
      %33 = dma.hbm_to_vmem [thread:$0]  %s1, 256, %s28, [#allocation6], 128, 128, 8
    $region9: #{tpu_custom_call.1} parent=1 // pred_fallthru
      _
    // Predicated region
    $region10: #{tpu_custom_call.1} parent=1 // pred_check
      _
    $region11: #{tpu_custom_call.1} parent=1 // pred_check_branch
      %35 = sbr.rel (0) target = $region13
    $region12: #{tpu_custom_call.1} parent=1 // pred_region
      %36 = dma.done [#allocation3], 256
    $region13: #{tpu_custom_call.1} parent=1 // pred_fallthru
      _
    // Predicated region
    $region14: #{tpu_custom_call.1} parent=1 // pred_check
      _
    $region15: #{tpu_custom_call.1} parent=1 // pred_check_branch
      %38 = sbr.rel (0) target = $region17
    $region16: #{tpu_custom_call.1} parent=1 // pred_region
      %39 = dma.done [#allocation6], 256
    $region17: #{tpu_custom_call.1} parent=1 // pred_fallthru
      _
    %p40 = scmp.eq.s32.totalorder 0, 0
    // Predicated region
    $region18: #{tpu_custom_call.1} parent=1 // pred_check
      %p41 = pneg %p40
    $region19: #{tpu_custom_call.1} parent=1 // pred_check_branch
      %43 = sbr.rel (%p41) target = $region21
    $region20: #{tpu_custom_call.1} parent=1 // pred_region
      %44 = vst [vmem:[#allocation7] sm:$0xff] 0.0
      %45 = vst [vmem:[#allocation7 + $0x8] sm:$0xff] 0.0
    $region21: #{tpu_custom_call.1} parent=1 // pred_fallthru
      _
    %v46 = vld [vmem:[#allocation2] sm:$0xff]
    %v47 = vld [vmem:[#allocation2 + $0x8] sm:$0xff]
    %v48 = vld [vmem:[#allocation5] sm:$0xff]
    %v49 = vld [vmem:[#allocation5 + $0x8] sm:$0xff]
    %v50 = vsub.f32 %v46, %v48
    %v51 = vsub.f32 %v47, %v49
    %v52 = vmul.f32 %v50, %v50
    %v53 = vmul.f32 %v51, %v51
    %v54 = vld [vmem:[#allocation7] sm:$0xff]
    %v55 = vld [vmem:[#allocation7 + $0x8] sm:$0xff]
    %v56 = vadd.f32 %v52, 0.0
    %v57 = vadd.f32 %v53, 0.0
    %v58 = vadd.f32 %v54, %v56
    %v59 = vadd.f32 %v55, %v57
    %60 = vst [vmem:[#allocation7] sm:$0xff] %v58
    %61 = vst [vmem:[#allocation7 + $0x8] sm:$0xff] %v59
    // Predicated region
    $region22: #{tpu_custom_call.1} parent=1 // pred_check
      _
    $region23: #{tpu_custom_call.1} parent=1 // pred_check_branch
      %63 = sbr.rel (0) target = $region25
    $region24: #{tpu_custom_call.1} parent=1 // pred_region
      %s65 = ssub.s32 256, 256
      %66 = vsyncadd [#allocation4], %s65
      %s67 = sshll.u32 [#allocation7], 4
      %s68 = int_to_ptr.vmem [resolvable:$true] %s67
      %73 = dma.vmem_to_hbm [thread:$0]  %s68, 256, %s2, [#allocation4], 128, 128, 8
    $region25: #{tpu_custom_call.1} parent=1 // pred_fallthru
      _
    // Predicated region
    $region26: #{tpu_custom_call.1} parent=1 // pred_check
      _
    $region27: #{tpu_custom_call.1} parent=1 // pred_check_branch
      %75 = sbr.rel (0) target = $region29
    $region28: #{tpu_custom_call.1} parent=1 // pred_region
      %76 = dma.done [#allocation4], 256
    $region29: #{tpu_custom_call.1} parent=1 // pred_fallthru
      _
    %77 = vsyncpa [#allocation3], 1
    %78 = vsyncpa [#allocation6], 1
    %79 = vsyncpa [#allocation4], 1

</llo_original>
